<compile_context>
chip_gen: v7x
topology: tpu7x:2x2x1
jax: 0.10.0
libtpu: 0.0.40
codegen_flags: <defaults>
</compile_context>

<pallas_src>
import jax
import jax.numpy as jnp
from jax.experimental import pallas as pl
from jax.experimental.pallas import tpu as pltpu


def _round_up(x, m):
    return ((x + m - 1) // m) * m


def _packed_scoring_kernel(x_ref, wsel_ref, b_ref, o_ref):
    # x_ref:    [TP, 128]  packed input tile (native dtype), natural orientation
    # wsel_ref: [128, P]   block-diagonal weight (constant across grid)
    # b_ref:    [1]        f32 bias scalar in SMEM
    # o_ref:    [TP, P]    sigmoid scores for P*TP original rows
    logits = jnp.dot(x_ref[...], wsel_ref[...],
                     preferred_element_type=jnp.float32)      # [TP, P] f32
    o_ref[...] = jax.nn.sigmoid(logits + b_ref[0]).astype(o_ref.dtype)


def egsct_classifier_forward(scores, weight, bias, *, block_bytes=4 * 1024 * 1024):
    """scores: [B, D]; weight: [1, D] (PyTorch Linear layout); bias: [1]
    ->  [B] sigmoid scores (same dtype as `scores`)."""
    B, D = scores.shape
    assert weight.shape == (1, D), "expected PyTorch Linear weight layout [1, D]"
    if D > 128 or 128 % D != 0:
        # TODO(synk): generic-D fallback (unpacked [TB, D] tiles); EGSC uses
        # bottle_neck_neurons in {16, 32, ...} which all divide 128.
        raise NotImplementedError("packed path requires D to divide 128")

    P = 128 // D                      # original rows packed per 128-lane row
    out_dtype = scores.dtype
    in_itemsize = jnp.dtype(scores.dtype).itemsize
    out_itemsize = jnp.dtype(out_dtype).itemsize
    bias_f32 = bias.reshape((1,)).astype(jnp.float32)

    # Tiny block-diagonal selection weight: Wsel[g*D + d, g] = w[d].
    eye = jnp.eye(P, dtype=jnp.float32)
    w_row = weight.reshape(D).astype(jnp.float32)
    wsel = (eye[:, None, :] * w_row[None, :, None]).reshape(P * D, P)
    wsel = wsel.astype(scores.dtype)

    b_main = (B // P) * P             # rows covered by the packed kernel
    np_rows = b_main // P             # packed rows

    main_flat = None
    if np_rows > 0:
        if b_main == B:
            packed = scores.reshape(np_rows, P * D)          # free reshape
        else:
            # Edge case (B % P != 0): prefix slice may copy; keep batch a
            # multiple of P upstream to avoid it.
            packed = scores[:b_main].reshape(np_rows, P * D)

        # Tile size: ~block_bytes of real input data per step, multiple of 8
        # packed rows (or the whole array if smaller).
        rows_target = _round_up(max(8, block_bytes // (128 * in_itemsize)), 8)
        tp = min(np_rows, rows_target)
        grid = pl.cdiv(np_rows, tp)

        cost = pl.CostEstimate(
            flops=2 * np_rows * 128 * P,
            transcendentals=np_rows * P,
            bytes_accessed=(np_rows * 128 * in_itemsize      # packed input
                            + np_rows * P * out_itemsize     # output
                            + 128 * P * in_itemsize + 4),    # weight + bias
        )

        out_main = pl.pallas_call(
            _packed_scoring_kernel,
            out_shape=jax.ShapeDtypeStruct((np_rows, P), out_dtype),
            grid=(grid,),
            in_specs=[
                pl.BlockSpec((tp, 128), lambda i: (i, 0)),            # packed x
                pl.BlockSpec((128, P), lambda i: (0, 0)),             # Wsel
                pl.BlockSpec(memory_space=pltpu.MemorySpace.SMEM),    # bias
            ],
            out_specs=pl.BlockSpec((tp, P), lambda i: (i, 0)),
            compiler_params=pltpu.CompilerParams(
                dimension_semantics=("parallel",),
                vmem_limit_bytes=32 * 1024 * 1024,
            ),
            cost_estimate=cost,
        )(packed, wsel, bias_f32)

        # Row-major flatten of (np_rows, P) recovers original row order.
        main_flat = out_main.reshape(-1)

    if b_main == B:
        return main_flat

    # Tail: at most P-1 rows, computed in plain JAX (negligible).
    tail = scores[b_main:].astype(jnp.float32)
    tail_out = jax.nn.sigmoid(tail @ weight.astype(jnp.float32).T + bias_f32)
    tail_out = tail_out.reshape(-1).astype(out_dtype)
    if main_flat is None:
        return tail_out
    return jnp.concatenate([main_flat, tail_out])


def _reference(scores, weight, bias):
    return jax.nn.sigmoid(scores @ weight.T + bias).reshape(-1)


if __name__ == "__main__":
    key = jax.random.PRNGKey(0)
    k_x, k_w, k_b, k_x2, k_x3 = jax.random.split(key, 5)

    D = 32  # bottle_neck_neurons

    weight = jax.random.normal(k_w, (1, D), dtype=jnp.float32) * 0.1
    bias = jax.random.normal(k_b, (1,), dtype=jnp.float32) * 0.1

    # Case 1: small batch, multiple of the packing factor (single tile, no
    # partial blocks, no tail).
    B = 32
    scores = jax.random.normal(k_x, (B, D), dtype=jnp.float32)
    out = jax.block_until_ready(egsct_classifier_forward(scores, weight, bias))
    ref = _reference(scores, weight, bias)
    assert out.shape == (B,)
    assert jnp.allclose(out, ref, atol=1e-5, rtol=1e-5)

    # Case 2: batch not a multiple of the packing factor, tiny tiles ->
    # multi-step grid, partial last block, and the plain-JAX tail path.
    B2 = 301
    scores2 = jax.random.normal(k_x2, (B2, D), dtype=jnp.float32)
    out2 = jax.block_until_ready(
        egsct_classifier_forward(scores2, weight, bias, block_bytes=8 * 128 * 4))
    ref2 = _reference(scores2, weight, bias)
    assert out2.shape == (B2,)
    assert jnp.allclose(out2, ref2, atol=1e-5, rtol=1e-5)

    # Case 3: bf16 producer -- kernel streams bf16 tiles (half the HBM bytes)
    # and accumulates in f32 on the MXU.
    B3 = 64
    scores3 = (jax.random.normal(k_x3, (B3, D), dtype=jnp.float32)
               .astype(jnp.bfloat16))
    out3 = jax.block_until_ready(egsct_classifier_forward(scores3, weight, bias))
    ref3 = _reference(scores3.astype(jnp.float32), weight, bias)
    assert out3.shape == (B3,)
    assert jnp.allclose(out3.astype(jnp.float32), ref3, atol=2e-2, rtol=2e-2)

    print("KERNEL_OK")
</pallas_src>

<mosaic_0001>
module attributes {stable_mosaic.version = 11 : i64} {
  func.func @_packed_scoring_kernel(%arg0: i32, %arg1: memref<8x128xf32, #tpu.memory_space<vmem>>, %arg2: memref<128x4xf32, #tpu.memory_space<vmem>>, %arg3: memref<1xf32, #tpu.memory_space<smem>>, %arg4: memref<8x4xf32, #tpu.memory_space<vmem>>) attributes {dimension_semantics = [#tpu.dimension_semantics<parallel>], iteration_bounds = array<i64: 1>, scalar_prefetch = 0 : i64, scratch_operands = 0 : i64, tpu.core_type = #tpu.core_type<tc>, window_params = [{transform_indices = @transform_0, window_bounds = array<i64: 8, 128>}, {pipeline_mode = #tpu.pipeline_mode<synchronous>, transform_indices = @transform_1, window_bounds = array<i64: 128, 4>}, {transform_indices = @transform_2, window_bounds = array<i64: 1>}, {transform_indices = @transform_3, window_bounds = array<i64: 8, 4>}]} {
    %c0 = arith.constant 0 : index
    %c0_0 = arith.constant 0 : index
    %0 = vector.load %arg1[%c0, %c0_0] : memref<8x128xf32, #tpu.memory_space<vmem>>, vector<8x128xf32>
    %c0_1 = arith.constant 0 : index
    %c0_2 = arith.constant 0 : index
    %1 = vector.load %arg2[%c0_1, %c0_2] : memref<128x4xf32, #tpu.memory_space<vmem>>, vector<128x4xf32>
    %cst = arith.constant dense<0.000000e+00> : vector<8x4xf32>
    %2 = tpu.matmul %0, %1, %cst {dimension_numbers = #tpu.dot_dimension_numbers<[1], [0], [0], [1], [0, 0, 1, 1], [], []>} : vector<8x128xf32>, vector<128x4xf32>, vector<8x4xf32> -> vector<8x4xf32>
    %c0_3 = arith.constant 0 : index
    %3 = memref.load %arg3[%c0_3] : memref<1xf32, #tpu.memory_space<smem>>
    %4 = vector.broadcast %3 : f32 to vector<8x4xf32>
    %5 = arith.addf %2, %4 : vector<8x4xf32>
    %6 = arith.negf %5 : vector<8x4xf32>
    %7 = math.exp %6 : vector<8x4xf32>
    %cst_4 = arith.constant 1.000000e+00 : f32
    %8 = vector.broadcast %cst_4 : f32 to vector<8x4xf32>
    %9 = arith.addf %8, %7 : vector<8x4xf32>
    %10 = arith.divf %8, %9 : vector<8x4xf32>
    %c0_5 = arith.constant 0 : index
    %c0_6 = arith.constant 0 : index
    %11 = vector.load %arg4[%c0_5, %c0_6] : memref<8x4xf32, #tpu.memory_space<vmem>>, vector<8x4xf32>
    tpu.vector_store %arg4[%c0_5, %c0_6], %10 {strides = array<i32>} : memref<8x4xf32, #tpu.memory_space<vmem>>, vector<8x4xf32>,
    return
  }
  func.func @transform_0(%arg0: i32) -> (i32, i32) {
    %c0_i32 = arith.constant 0 : i32
    %c0_i32_0 = arith.constant 0 : i32
    return %arg0, %c0_i32 : i32, i32
  }
  func.func @transform_1(%arg0: i32) -> (i32, i32) {
    %c0_i32 = arith.constant 0 : i32
    %c0_i32_0 = arith.constant 0 : i32
    %c0_i32_1 = arith.constant 0 : i32
    return %c0_i32, %c0_i32_0 : i32, i32
  }
  func.func @transform_2(%arg0: i32) -> i32 {
    %c0_i32 = arith.constant 0 : i32
    %c0_i32_0 = arith.constant 0 : i32
    return %c0_i32 : i32
  }
  func.func @transform_3(%arg0: i32) -> (i32, i32) {
    %c0_i32 = arith.constant 0 : i32
    %c0_i32_0 = arith.constant 0 : i32
    return %arg0, %c0_i32 : i32, i32
  }
}

</mosaic_0001>

<llo_original>
// kernel: tpu_custom_call.1
$region0: #{tpu_custom_call.1}
  #allocation0 [shape = 'u32[]', space=smem, size = 0x4, offset = 0x4, fixed_abs, tag = 'smem constant byte address 0x4 - core index']
  #allocation1 [shape = 'u32[144,128]{1,0:T(1,128)}', space=vmem, size = 0x12000, scoped, tag = 'internal scratch']
  #allocation2 [shape = 'f32[1]{0:T(128)S(6)}', space=smem, size = 0x200, scoped, tag = 'scoped memory for tpu_custom_call.1']
  %s0 = inlined_call_operand.vmem [shape: f32[8,128], index: 0, kind: input, shape index: {}]
  %s1 = inlined_call_operand.vmem [shape: f32[128,4], index: 1, kind: input, shape index: {}]
  %s2 = inlined_call_operand.<no memory space> [shape: f32[1], index: 2, kind: input, shape index: {}]
  %s3 = inlined_call_operand.vmem [shape: f32[8,4], index: 3, kind: output, shape index: {}]
  %s4 = sld [smem:[#allocation0]]
  $region22: #{tpu_custom_call.1} parent=0
    _
  %s6 = ssub.s32 1, %s4
  %s7 = scalar_select 0, %s6, %s4
  %8 = sst [smem:[#allocation2]] %s2
  // Predicated region
  $region2: #{tpu_custom_call.1} parent=0 // pred_check
    _
  $region3: #{tpu_custom_call.1} parent=0 // pred_check_branch
    %10 = sbr.rel (0) target = $region5
  $region4: #{tpu_custom_call.1} parent=0 // pred_region
    _
  $region5: #{tpu_custom_call.1} parent=0 // pred_fallthru
    _
  // Predicated region
  $region6: #{tpu_custom_call.1} parent=0 // pred_check
    _
  $region7: #{tpu_custom_call.1} parent=0 // pred_check_branch
    %12 = sbr.rel (0) target = $region9
  $region8: #{tpu_custom_call.1} parent=0 // pred_region
    _
  $region9: #{tpu_custom_call.1} parent=0 // pred_fallthru
    _
  // Predicated region
  $region10: #{tpu_custom_call.1} parent=0 // pred_check
    _
  $region11: #{tpu_custom_call.1} parent=0 // pred_check_branch
    %14 = sbr.rel (0) target = $region13
  $region12: #{tpu_custom_call.1} parent=0 // pred_region
    _
  $region13: #{tpu_custom_call.1} parent=0 // pred_fallthru
    _
  %v15 = vld [vmem:[%s0] sm:$0xff]
  %v16 = vld [vmem:[%s1] sm:$0xff]
  %v17 = vld [vmem:[%s1 + $0x8] sm:$0xff]
  %v18 = vld [vmem:[%s1 + $0x10] sm:$0xff]
  %v19 = vld [vmem:[%s1 + $0x18] sm:$0xff]
  %v20 = vld [vmem:[%s1 + $0x20] sm:$0xff]
  %v21 = vld [vmem:[%s1 + $0x28] sm:$0xff]
  %v22 = vld [vmem:[%s1 + $0x30] sm:$0xff]
  %v23 = vld [vmem:[%s1 + $0x38] sm:$0xff]
  %v24 = vld [vmem:[%s1 + $0x40] sm:$0xff]
  %v25 = vld [vmem:[%s1 + $0x48] sm:$0xff]
  %v26 = vld [vmem:[%s1 + $0x50] sm:$0xff]
  %v27 = vld [vmem:[%s1 + $0x58] sm:$0xff]
  %v28 = vld [vmem:[%s1 + $0x60] sm:$0xff]
  %v29 = vld [vmem:[%s1 + $0x68] sm:$0xff]
  %v30 = vld [vmem:[%s1 + $0x70] sm:$0xff]
  %v31 = vld [vmem:[%s1 + $0x78] sm:$0xff]
  %s32 = sld [smem:[#allocation2]]
  %v33 = vstv %s32
  %34 = vmatprep.subr.mxu0 0.0
  %35 = vmatpush1.msra.mxu0 %v16
  %36 = vmatprep.subr.mxu0 0.0
  %37 = vmatpush1.msra.mxu0 %v17
  %38 = vmatprep.subr.mxu0 0.0
  %39 = vmatpush1.msra.mxu0 %v18
  %40 = vmatprep.subr.mxu0 0.0
  %41 = vmatpush1.msra.mxu0 %v19
  %42 = vmatprep.subr.mxu0 0.0
  %43 = vmatpush1.msra.mxu0 %v20
  %44 = vmatprep.subr.mxu0 0.0
  %45 = vmatpush1.msra.mxu0 %v21
  %46 = vmatprep.subr.mxu0 0.0
  %47 = vmatpush1.msra.mxu0 %v22
  %48 = vmatprep.subr.mxu0 0.0
  %49 = vmatpush1.msra.mxu0 %v23
  %50 = vmatprep.subr.mxu0 0.0
  %51 = vmatpush1.msra.mxu0 %v24
  %52 = vmatprep.subr.mxu0 0.0
  %53 = vmatpush1.msra.mxu0 %v25
  %54 = vmatprep.subr.mxu0 0.0
  %55 = vmatpush1.msra.mxu0 %v26
  %56 = vmatprep.subr.mxu0 0.0
  %57 = vmatpush1.msra.mxu0 %v27
  %58 = vmatprep.subr.mxu0 0.0
  %59 = vmatpush1.msra.mxu0 %v28
  %60 = vmatprep.subr.mxu0 0.0
  %61 = vmatpush1.msra.mxu0 %v29
  %62 = vmatprep.subr.mxu0 0.0
  %63 = vmatpush1.msra.mxu0 %v30
  %64 = vmatprep.subr.mxu0 0.0
  %65 = vmatpush1.msra.mxu0 %v31
  %66 = vmatprep.subr.mxu0 0.0
  %67 = vmatpush1.msra.mxu0 0.0
  %68 = vmatprep.subr.mxu0 0.0
  %69 = vmatpush1.msra.mxu0 0.0
  %70 = vmatprep.subr.mxu0 0.0
  %71 = vmatpush1.msra.mxu0 0.0
  %72 = vmatprep.subr.mxu0 0.0
  %73 = vmatpush1.msra.mxu0 0.0
  %74 = vmatprep.subr.mxu0 0.0
  %75 = vmatpush1.msra.mxu0 0.0
  %76 = vmatprep.subr.mxu0 0.0
  %77 = vmatpush1.msra.mxu0 0.0
  %78 = vmatprep.subr.mxu0 0.0
  %79 = vmatpush1.msra.mxu0 0.0
  %80 = vmatprep.subr.mxu0 0.0
  %81 = vmatpush1.msra.mxu0 0.0
  %82 = vmatprep.subr.mxu0 0.0
  %83 = vmatpush1.msra.mxu0 0.0
  %84 = vmatprep.subr.mxu0 0.0
  %85 = vmatpush1.msra.mxu0 0.0
  %86 = vmatprep.subr.mxu0 0.0
  %87 = vmatpush1.msra.mxu0 0.0
  %88 = vmatprep.subr.mxu0 0.0
  %89 = vmatpush1.msra.mxu0 0.0
  %90 = vmatprep.subr.mxu0 0.0
  %91 = vmatpush1.msra.mxu0 0.0
  %92 = vmatprep.subr.mxu0 0.0
  %93 = vmatpush1.msra.mxu0 0.0
  %94 = vmatprep.subr.mxu0 0.0
  %95 = vmatpush1.msra.mxu0 0.0
  %96 = vmatprep.subr.mxu0 0.0
  %97 = vmatpush1.msra.mxu0 0.0
  %98 = vmatprep.mubr.f32.mxu0 0.0
  %99 = vmatmul.mubr.f32.gmra.mrb[0].mxu0 %v15
  %v100 = vpop.f32.mrb[0].mxu0
  %v101 = vadd.f32 %v33, %v100
  %v102 = vpop.f32.mrb[0].mxu0
  %103 = vdwg.mxu0
  %v104 = vxor.u32 %v101, 2147483648
  %v105 = vmul.f32 %v104, 1.442695
  %v106 = vpow.pop %v105
  %v107 = vadd.f32 %v106, 1.0
  %v108 = vrcp.pop %v107
  %v109 = vmul.f32 1.0, %v108
  %vm110 = vcmask 31744
  %111 = vst.msk [vmem:[%s3] sm:$0xff] %vm110, %v109
  // Predicated region
  $region14: #{tpu_custom_call.1} parent=0 // pred_check
    _
  $region15: #{tpu_custom_call.1} parent=0 // pred_check_branch
    %113 = sbr.rel (0) target = $region17
  $region16: #{tpu_custom_call.1} parent=0 // pred_region
    _
  $region17: #{tpu_custom_call.1} parent=0 // pred_fallthru
    _
  // Predicated region
  $region18: #{tpu_custom_call.1} parent=0 // pred_check
    _
  $region19: #{tpu_custom_call.1} parent=0 // pred_check_branch
    %115 = sbr.rel (0) target = $region21
  $region20: #{tpu_custom_call.1} parent=0 // pred_region
    _
  $region21: #{tpu_custom_call.1} parent=0 // pred_fallthru
    _

</llo_original>
